<compile_context>
chip_gen: v5e
topology: v5e:2x2
jax: 0.10.0
libtpu: 0.0.40
codegen_flags: <defaults>
</compile_context>

<pallas_src>
import functools

import jax
import jax.numpy as jnp
from jax.experimental import pallas as pl
from jax.experimental.pallas import tpu as pltpu

BN_EPS = 1e-5


def _gbn(y, gamma, beta, n_sub, chunk):
    """Training-mode BatchNorm over each `chunk`-row ghost batch of y (f32)."""
    rows, d = y.shape
    y3 = y.reshape(n_sub, chunk, d)            # leading-dim split: free reshape
    mean = jnp.mean(y3, axis=1, keepdims=True)
    centered = y3 - mean
    var = jnp.mean(centered * centered, axis=1, keepdims=True)  # biased var
    yh = centered * jax.lax.rsqrt(var + BN_EPS)
    yh = yh * gamma + beta                     # (1, d) broadcasts over (G, C, d)
    return yh.reshape(rows, d)


def _glu_kernel(x_ref, wa_ref, wg_ref, ga_ref, ba_ref, gg_ref, bg_ref,
                out_ref, *, n_sub, chunk):
    x = x_ref[...]
    # Two lane-dense matmuls: bf16 inputs, f32 accumulation on the MXU.  The
    # GLU a/gate split is by operand, so no sub-128 lane slicing is needed.
    a = jnp.dot(x, wa_ref[...], preferred_element_type=jnp.float32)
    g = jnp.dot(x, wg_ref[...], preferred_element_type=jnp.float32)

    # NOTE: the fc bias is intentionally not added: training-mode ghost BN
    # subtracts the per-chunk mean, which cancels any constant column offset.
    a = _gbn(a, ga_ref[...], ba_ref[...], n_sub, chunk)
    g = _gbn(g, gg_ref[...], bg_ref[...], n_sub, chunk)

    out_ref[...] = (a * jax.nn.sigmoid(g)).astype(out_ref.dtype)


def _chunks_per_block(n_chunks, chunk, target_rows):
    """Largest number of ghost batches per grid step such that
       * it divides n_chunks evenly,
       * the block stays near `target_rows` rows,
       * >= 2 grid steps remain when possible (v7x megacore sharding),
       * multi-step blocks stay sublane (8-row) aligned."""
    best = 1
    for cb in range(1, n_chunks + 1):
        if n_chunks % cb:
            continue
        if cb > 1 and cb * chunk > target_rows:
            continue
        n_steps = n_chunks // cb
        if n_chunks >= 2 and n_steps < 2:
            continue
        if n_steps > 1 and (cb * chunk) % 8:
            continue
        best = max(best, cb)
    return best


def glu_forward(x, w, b, gamma, beta, *, out_dim, vbs=128,
                compute_dtype=jnp.bfloat16, target_block_rows=4096):
    """x: (N, inp_dim); w: (inp_dim, 2*out_dim) = fc.weight.T;
    b/gamma/beta: (2*out_dim,).  Returns (N, out_dim) in x.dtype.

    `b` is accepted for API parity but unused: with training-mode ghost
    BatchNorm the per-chunk mean subtraction cancels the bias exactly.
    """
    del b
    n, inp_dim = x.shape
    two_od = w.shape[1]
    assert two_od == 2 * out_dim

    # torch.chunk(x, max(1, N // vbs)) semantics (number of chunks = floor).
    n_chunks = max(1, n // vbs)
    # TODO(synk): support ragged torch.chunk splits (n % n_chunks != 0).
    assert n % n_chunks == 0, "kernel assumes equal-size ghost batches"
    chunk = n // n_chunks

    cb = _chunks_per_block(n_chunks, chunk, target_block_rows)
    block_rows = cb * chunk
    grid = (n_chunks // cb,)

    out_dtype = x.dtype
    x_c = x.astype(compute_dtype)
    w_a = w[:, :out_dim].astype(compute_dtype)
    w_g = w[:, out_dim:].astype(compute_dtype)
    ga = gamma[:out_dim].reshape(1, out_dim).astype(jnp.float32)
    gg = gamma[out_dim:].reshape(1, out_dim).astype(jnp.float32)
    ba = beta[:out_dim].reshape(1, out_dim).astype(jnp.float32)
    bg = beta[out_dim:].reshape(1, out_dim).astype(jnp.float32)

    # TODO(synk): BatchNorm running_mean/running_var momentum updates (training
    # side effect) are not computed; forward output is unaffected.

    # VMEM budget: double-buffered x/out blocks, resident weights, f32
    # intermediates.  Explicit limit with headroom, capped at v7x's 64 MiB.
    in_sz = jnp.dtype(compute_dtype).itemsize
    out_sz = jnp.dtype(out_dtype).itemsize
    vmem_bytes = (2 * block_rows * inp_dim * in_sz
                  + 2 * block_rows * out_dim * out_sz
                  + 4 * inp_dim * out_dim * in_sz
                  + 8 * out_dim * 4
                  + 8 * block_rows * out_dim * 4)
    vmem_limit = int(min(max(1.25 * vmem_bytes, 8 << 20), 64 << 20))

    kernel = functools.partial(_glu_kernel, n_sub=cb, chunk=chunk)

    resident = lambda i: (0, 0)  # constant index map -> VMEM-resident, no re-DMA

    return pl.pallas_call(
        kernel,
        out_shape=jax.ShapeDtypeStruct((n, out_dim), out_dtype),
        grid_spec=pltpu.PrefetchScalarGridSpec(
            num_scalar_prefetch=0,
            grid=grid,
            in_specs=[
                pl.BlockSpec((block_rows, inp_dim), lambda i: (i, 0)),  # x block
                pl.BlockSpec((inp_dim, out_dim), resident),             # W_a
                pl.BlockSpec((inp_dim, out_dim), resident),             # W_g
                pl.BlockSpec((1, out_dim), resident),                   # gamma_a
                pl.BlockSpec((1, out_dim), resident),                   # beta_a
                pl.BlockSpec((1, out_dim), resident),                   # gamma_g
                pl.BlockSpec((1, out_dim), resident),                   # beta_g
            ],
            out_specs=pl.BlockSpec((block_rows, out_dim), lambda i: (i, 0)),
        ),
        compiler_params=pltpu.CompilerParams(
            dimension_semantics=("parallel",),
            vmem_limit_bytes=vmem_limit,
        ),
    )(x_c, w_a, w_g, ga, ba, gg, bg)


def glu_reference(x, w, b, gamma, beta, *, out_dim, vbs=128,
                  compute_dtype=jnp.bfloat16):
    """Pure-JAX reference mirroring the PyTorch module (training-mode BN),
    using the same bf16 matmul inputs / f32 accumulation as the kernel."""
    n = x.shape[0]
    n_chunks = max(1, n // vbs)
    y = jnp.dot(x.astype(compute_dtype), w.astype(compute_dtype),
                preferred_element_type=jnp.float32) + b
    chunks = jnp.split(y, n_chunks, axis=0)
    res = []
    for c in chunks:
        mean = jnp.mean(c, axis=0, keepdims=True)
        var = jnp.mean((c - mean) ** 2, axis=0, keepdims=True)
        res.append((c - mean) / jnp.sqrt(var + BN_EPS) * gamma + beta)
    y = jnp.concatenate(res, axis=0)
    return (y[:, :out_dim] * jax.nn.sigmoid(y[:, out_dim:])).astype(x.dtype)


if __name__ == "__main__":
    # Shapes consistent with the module: GLU(inp_dim=32, out_dim=16, vbs=128).
    inp_dim, out_dim, vbs = 32, 16, 128

    key = jax.random.PRNGKey(0)
    kx1, kx2, kw, kb = jax.random.split(key, 4)

    # Deterministic synthetic parameters (not from a checkpoint).
    # nn.Linear(inp_dim, 2*out_dim): weight (2*od, inp_dim) — stored transposed.
    bound = 1.0 / jnp.sqrt(inp_dim)
    w = jax.random.uniform(kw, (inp_dim, 2 * out_dim), jnp.float32, -bound, bound)
    b = jax.random.uniform(kb, (2 * out_dim,), jnp.float32, -bound, bound)
    # BatchNorm1d default affine init: gamma = 1, beta = 0.
    gamma = jnp.ones((2 * out_dim,), jnp.float32)
    beta = jnp.zeros((2 * out_dim,), jnp.float32)

    # Case 1: batch < vbs -> single ghost batch.
    # Case 2: two ghost batches -> exercises per-chunk BN blocking and the
    #         2-step parallel grid (both TensorCores on v7x).
    for kx, batch in ((kx1, 8), (kx2, 256)):
        x = jax.random.normal(kx, (batch, inp_dim), dtype=jnp.float32)
        out = glu_forward(x, w, b, gamma, beta, out_dim=out_dim, vbs=vbs)
        out = jax.block_until_ready(out)
        ref = glu_reference(x, w, b, gamma, beta, out_dim=out_dim, vbs=vbs)
        assert out.shape == (batch, out_dim)
        assert jnp.allclose(out, ref, atol=1e-4, rtol=1e-4), (
            f"mismatch vs reference for batch={batch}")

    print("KERNEL_OK")
</pallas_src>

<mosaic_0001>
module attributes {stable_mosaic.version = 11 : i64} {
  func.func @_glu_kernel(%arg0: i32, %arg1: memref<8x32xbf16, #tpu.memory_space<vmem>>, %arg2: memref<32x16xbf16, #tpu.memory_space<vmem>>, %arg3: memref<32x16xbf16, #tpu.memory_space<vmem>>, %arg4: memref<1x16xf32, #tpu.memory_space<vmem>>, %arg5: memref<1x16xf32, #tpu.memory_space<vmem>>, %arg6: memref<1x16xf32, #tpu.memory_space<vmem>>, %arg7: memref<1x16xf32, #tpu.memory_space<vmem>>, %arg8: memref<8x16xf32, #tpu.memory_space<vmem>>) attributes {dimension_semantics = [#tpu.dimension_semantics<parallel>], iteration_bounds = array<i64: 1>, scalar_prefetch = 0 : i64, scratch_operands = 0 : i64, tpu.core_type = #tpu.core_type<tc>, window_params = [{transform_indices = @transform_0, window_bounds = array<i64: 8, 32>}, {pipeline_mode = #tpu.pipeline_mode<synchronous>, transform_indices = @transform_1, window_bounds = array<i64: 32, 16>}, {pipeline_mode = #tpu.pipeline_mode<synchronous>, transform_indices = @transform_2, window_bounds = array<i64: 32, 16>}, {pipeline_mode = #tpu.pipeline_mode<synchronous>, transform_indices = @transform_3, window_bounds = array<i64: 1, 16>}, {pipeline_mode = #tpu.pipeline_mode<synchronous>, transform_indices = @transform_4, window_bounds = array<i64: 1, 16>}, {pipeline_mode = #tpu.pipeline_mode<synchronous>, transform_indices = @transform_5, window_bounds = array<i64: 1, 16>}, {pipeline_mode = #tpu.pipeline_mode<synchronous>, transform_indices = @transform_6, window_bounds = array<i64: 1, 16>}, {transform_indices = @transform_7, window_bounds = array<i64: 8, 16>}]} {
    %c0 = arith.constant 0 : index
    %c0_0 = arith.constant 0 : index
    %0 = vector.load %arg1[%c0, %c0_0] : memref<8x32xbf16, #tpu.memory_space<vmem>>, vector<8x32xbf16>
    %c0_1 = arith.constant 0 : index
    %c0_2 = arith.constant 0 : index
    %1 = vector.load %arg2[%c0_1, %c0_2] : memref<32x16xbf16, #tpu.memory_space<vmem>>, vector<32x16xbf16>
    %cst = arith.constant dense<0.000000e+00> : vector<8x16xf32>
    %2 = tpu.matmul %0, %1, %cst {dimension_numbers = #tpu.dot_dimension_numbers<[1], [0], [0], [1], [0, 0, 1, 1], [], []>} : vector<8x32xbf16>, vector<32x16xbf16>, vector<8x16xf32> -> vector<8x16xf32>
    %c0_3 = arith.constant 0 : index
    %c0_4 = arith.constant 0 : index
    %3 = vector.load %arg3[%c0_3, %c0_4] : memref<32x16xbf16, #tpu.memory_space<vmem>>, vector<32x16xbf16>
    %cst_5 = arith.constant dense<0.000000e+00> : vector<8x16xf32>
    %4 = tpu.matmul %0, %3, %cst_5 {dimension_numbers = #tpu.dot_dimension_numbers<[1], [0], [0], [1], [0, 0, 1, 1], [], []>} : vector<8x32xbf16>, vector<32x16xbf16>, vector<8x16xf32> -> vector<8x16xf32>
    %c0_6 = arith.constant 0 : index
    %c0_7 = arith.constant 0 : index
    %5 = vector.load %arg4[%c0_6, %c0_7] : memref<1x16xf32, #tpu.memory_space<vmem>>, vector<1x16xf32>
    %c0_8 = arith.constant 0 : index
    %c0_9 = arith.constant 0 : index
    %6 = vector.load %arg5[%c0_8, %c0_9] : memref<1x16xf32, #tpu.memory_space<vmem>>, vector<1x16xf32>
    %7 = vector.shape_cast %2 : vector<8x16xf32> to vector<1x8x16xf32>
    %cst_10 = arith.constant dense<0.000000e+00> : vector<1x16xf32>
    %8 = vector.multi_reduction <add>, %7, %cst_10 [1] : vector<1x8x16xf32> to vector<1x16xf32>
    %9 = vector.shape_cast %8 : vector<1x16xf32> to vector<1x1x16xf32>
    %cst_11 = arith.constant 8.000000e+00 : f32
    %10 = vector.broadcast %cst_11 : f32 to vector<1x1x16xf32>
    %11 = arith.divf %9, %10 : vector<1x1x16xf32>
    %12 = vector.broadcast %11 : vector<1x1x16xf32> to vector<1x8x16xf32>
    %13 = arith.subf %7, %12 : vector<1x8x16xf32>
    %14 = arith.mulf %13, %13 : vector<1x8x16xf32>
    %cst_12 = arith.constant dense<0.000000e+00> : vector<1x16xf32>
    %15 = vector.multi_reduction <add>, %14, %cst_12 [1] : vector<1x8x16xf32> to vector<1x16xf32>
    %16 = vector.shape_cast %15 : vector<1x16xf32> to vector<1x1x16xf32>
    %cst_13 = arith.constant 8.000000e+00 : f32
    %17 = vector.broadcast %cst_13 : f32 to vector<1x1x16xf32>
    %18 = arith.divf %16, %17 : vector<1x1x16xf32>
    %cst_14 = arith.constant 9.99999974E-6 : f32
    %19 = vector.broadcast %cst_14 : f32 to vector<1x1x16xf32>
    %20 = arith.addf %18, %19 : vector<1x1x16xf32>
    %21 = math.rsqrt %20 : vector<1x1x16xf32>
    %22 = vector.broadcast %21 : vector<1x1x16xf32> to vector<1x8x16xf32>
    %23 = arith.mulf %13, %22 : vector<1x8x16xf32>
    %24 = vector.shape_cast %5 : vector<1x16xf32> to vector<1x1x16xf32>
    %25 = vector.broadcast %24 : vector<1x1x16xf32> to vector<1x8x16xf32>
    %26 = arith.mulf %23, %25 : vector<1x8x16xf32>
    %27 = vector.shape_cast %6 : vector<1x16xf32> to vector<1x1x16xf32>
    %28 = vector.broadcast %27 : vector<1x1x16xf32> to vector<1x8x16xf32>
    %29 = arith.addf %26, %28 : vector<1x8x16xf32>
    %30 = vector.shape_cast %29 : vector<1x8x16xf32> to vector<8x16xf32>
    %c0_15 = arith.constant 0 : index
    %c0_16 = arith.constant 0 : index
    %31 = vector.load %arg6[%c0_15, %c0_16] : memref<1x16xf32, #tpu.memory_space<vmem>>, vector<1x16xf32>
    %c0_17 = arith.constant 0 : index
    %c0_18 = arith.constant 0 : index
    %32 = vector.load %arg7[%c0_17, %c0_18] : memref<1x16xf32, #tpu.memory_space<vmem>>, vector<1x16xf32>
    %33 = vector.shape_cast %4 : vector<8x16xf32> to vector<1x8x16xf32>
    %cst_19 = arith.constant dense<0.000000e+00> : vector<1x16xf32>
    %34 = vector.multi_reduction <add>, %33, %cst_19 [1] : vector<1x8x16xf32> to vector<1x16xf32>
    %35 = vector.shape_cast %34 : vector<1x16xf32> to vector<1x1x16xf32>
    %cst_20 = arith.constant 8.000000e+00 : f32
    %36 = vector.broadcast %cst_20 : f32 to vector<1x1x16xf32>
    %37 = arith.divf %35, %36 : vector<1x1x16xf32>
    %38 = vector.broadcast %37 : vector<1x1x16xf32> to vector<1x8x16xf32>
    %39 = arith.subf %33, %38 : vector<1x8x16xf32>
    %40 = arith.mulf %39, %39 : vector<1x8x16xf32>
    %cst_21 = arith.constant dense<0.000000e+00> : vector<1x16xf32>
    %41 = vector.multi_reduction <add>, %40, %cst_21 [1] : vector<1x8x16xf32> to vector<1x16xf32>
    %42 = vector.shape_cast %41 : vector<1x16xf32> to vector<1x1x16xf32>
    %cst_22 = arith.constant 8.000000e+00 : f32
    %43 = vector.broadcast %cst_22 : f32 to vector<1x1x16xf32>
    %44 = arith.divf %42, %43 : vector<1x1x16xf32>
    %cst_23 = arith.constant 9.99999974E-6 : f32
    %45 = vector.broadcast %cst_23 : f32 to vector<1x1x16xf32>
    %46 = arith.addf %44, %45 : vector<1x1x16xf32>
    %47 = math.rsqrt %46 : vector<1x1x16xf32>
    %48 = vector.broadcast %47 : vector<1x1x16xf32> to vector<1x8x16xf32>
    %49 = arith.mulf %39, %48 : vector<1x8x16xf32>
    %50 = vector.shape_cast %31 : vector<1x16xf32> to vector<1x1x16xf32>
    %51 = vector.broadcast %50 : vector<1x1x16xf32> to vector<1x8x16xf32>
    %52 = arith.mulf %49, %51 : vector<1x8x16xf32>
    %53 = vector.shape_cast %32 : vector<1x16xf32> to vector<1x1x16xf32>
    %54 = vector.broadcast %53 : vector<1x1x16xf32> to vector<1x8x16xf32>
    %55 = arith.addf %52, %54 : vector<1x8x16xf32>
    %56 = vector.shape_cast %55 : vector<1x8x16xf32> to vector<8x16xf32>
    %57 = arith.negf %56 : vector<8x16xf32>
    %58 = math.exp %57 : vector<8x16xf32>
    %cst_24 = arith.constant 1.000000e+00 : f32
    %59 = vector.broadcast %cst_24 : f32 to vector<8x16xf32>
    %60 = arith.addf %59, %58 : vector<8x16xf32>
    %61 = arith.divf %59, %60 : vector<8x16xf32>
    %62 = arith.mulf %30, %61 : vector<8x16xf32>
    %c0_25 = arith.constant 0 : index
    %c0_26 = arith.constant 0 : index
    %63 = vector.load %arg8[%c0_25, %c0_26] : memref<8x16xf32, #tpu.memory_space<vmem>>, vector<8x16xf32>
    tpu.vector_store %arg8[%c0_25, %c0_26], %62 {strides = array<i32>} : memref<8x16xf32, #tpu.memory_space<vmem>>, vector<8x16xf32>,
    return
  }
  func.func @transform_0(%arg0: i32) -> (i32, i32) {
    %c0_i32 = arith.constant 0 : i32
    %c0_i32_0 = arith.constant 0 : i32
    return %arg0, %c0_i32 : i32, i32
  }
  func.func @transform_1(%arg0: i32) -> (i32, i32) {
    %c0_i32 = arith.constant 0 : i32
    %c0_i32_0 = arith.constant 0 : i32
    %c0_i32_1 = arith.constant 0 : i32
    return %c0_i32, %c0_i32_0 : i32, i32
  }
  func.func @transform_2(%arg0: i32) -> (i32, i32) {
    %c0_i32 = arith.constant 0 : i32
    %c0_i32_0 = arith.constant 0 : i32
    %c0_i32_1 = arith.constant 0 : i32
    return %c0_i32, %c0_i32_0 : i32, i32
  }
  func.func @transform_3(%arg0: i32) -> (i32, i32) {
    %c0_i32 = arith.constant 0 : i32
    %c0_i32_0 = arith.constant 0 : i32
    %c0_i32_1 = arith.constant 0 : i32
    return %c0_i32, %c0_i32_0 : i32, i32
  }
  func.func @transform_4(%arg0: i32) -> (i32, i32) {
    %c0_i32 = arith.constant 0 : i32
    %c0_i32_0 = arith.constant 0 : i32
    %c0_i32_1 = arith.constant 0 : i32
    return %c0_i32, %c0_i32_0 : i32, i32
  }
  func.func @transform_5(%arg0: i32) -> (i32, i32) {
    %c0_i32 = arith.constant 0 : i32
    %c0_i32_0 = arith.constant 0 : i32
    %c0_i32_1 = arith.constant 0 : i32
    return %c0_i32, %c0_i32_0 : i32, i32
  }
  func.func @transform_6(%arg0: i32) -> (i32, i32) {
    %c0_i32 = arith.constant 0 : i32
    %c0_i32_0 = arith.constant 0 : i32
    %c0_i32_1 = arith.constant 0 : i32
    return %c0_i32, %c0_i32_0 : i32, i32
  }
  func.func @transform_7(%arg0: i32) -> (i32, i32) {
    %c0_i32 = arith.constant 0 : i32
    %c0_i32_0 = arith.constant 0 : i32
    return %arg0, %c0_i32 : i32, i32
  }
}

</mosaic_0001>

<llo_original>
// kernel: tpu_custom_call.1
$region0: #{tpu_custom_call.1}
  #allocation0 [shape = 'u32[]', space=smem, size = 0x4, offset = 0x4, fixed_abs, tag = 'smem constant byte address 0x4 - core index']
  #allocation1 [shape = 'u32[72,128]{1,0:T(1,128)}', space=vmem, size = 0x9000, scoped, tag = 'internal scratch']
  %s0 = inlined_call_operand.vmem [shape: bf16[8,32], index: 0, kind: input, shape index: {}]
  %s1 = inlined_call_operand.vmem [shape: bf16[32,16], index: 1, kind: input, shape index: {}]
  %s2 = inlined_call_operand.vmem [shape: bf16[32,16], index: 2, kind: input, shape index: {}]
  %s3 = inlined_call_operand.vmem [shape: f32[1,16], index: 3, kind: input, shape index: {}]
  %s4 = inlined_call_operand.vmem [shape: f32[1,16], index: 4, kind: input, shape index: {}]
  %s5 = inlined_call_operand.vmem [shape: f32[1,16], index: 5, kind: input, shape index: {}]
  %s6 = inlined_call_operand.vmem [shape: f32[1,16], index: 6, kind: input, shape index: {}]
  %s7 = inlined_call_operand.hbm [shape: f32[8,16], index: 7, kind: output, shape index: {}]
  %s8 = sld [smem:[#allocation0]]
  $region38: #{tpu_custom_call.1} parent=0
    _
  %s10 = ssub.s32 1, %s8
  %s11 = scalar_select 0, %s10, %s8
  $region1: #{tpu_custom_call.1} parent=0
    #allocation2 [shape = 'u8[4096]{0}', space=vmem, size = 0x1000, scoped, tag = 'output window, operand 0, single buffered']
    #allocation3 [shape = 's32[1]{0}', space=sflag, size = 0x4, scoped, tag = 'scoped memory for tpu_custom_call.1']
    %12 = vsyncpa [#allocation3], 0
    // Predicated region
    $region2: #{tpu_custom_call.1} parent=1 // pred_check
      _
    $region3: #{tpu_custom_call.1} parent=1 // pred_check_branch
      %14 = sbr.rel (0) target = $region5
    $region4: #{tpu_custom_call.1} parent=1 // pred_region
      _
    $region5: #{tpu_custom_call.1} parent=1 // pred_fallthru
      _
    // Predicated region
    $region6: #{tpu_custom_call.1} parent=1 // pred_check
      _
    $region7: #{tpu_custom_call.1} parent=1 // pred_check_branch
      %16 = sbr.rel (0) target = $region9
    $region8: #{tpu_custom_call.1} parent=1 // pred_region
      _
    $region9: #{tpu_custom_call.1} parent=1 // pred_fallthru
      _
    // Predicated region
    $region10: #{tpu_custom_call.1} parent=1 // pred_check
      _
    $region11: #{tpu_custom_call.1} parent=1 // pred_check_branch
      %18 = sbr.rel (0) target = $region13
    $region12: #{tpu_custom_call.1} parent=1 // pred_region
      _
    $region13: #{tpu_custom_call.1} parent=1 // pred_fallthru
      _
    // Predicated region
    $region14: #{tpu_custom_call.1} parent=1 // pred_check
      _
    $region15: #{tpu_custom_call.1} parent=1 // pred_check_branch
      %20 = sbr.rel (0) target = $region17
    $region16: #{tpu_custom_call.1} parent=1 // pred_region
      _
    $region17: #{tpu_custom_call.1} parent=1 // pred_fallthru
      _
    // Predicated region
    $region18: #{tpu_custom_call.1} parent=1 // pred_check
      _
    $region19: #{tpu_custom_call.1} parent=1 // pred_check_branch
      %22 = sbr.rel (0) target = $region21
    $region20: #{tpu_custom_call.1} parent=1 // pred_region
      _
    $region21: #{tpu_custom_call.1} parent=1 // pred_fallthru
      _
    // Predicated region
    $region22: #{tpu_custom_call.1} parent=1 // pred_check
      _
    $region23: #{tpu_custom_call.1} parent=1 // pred_check_branch
      %24 = sbr.rel (0) target = $region25
    $region24: #{tpu_custom_call.1} parent=1 // pred_region
      _
    $region25: #{tpu_custom_call.1} parent=1 // pred_fallthru
      _
    // Predicated region
    $region26: #{tpu_custom_call.1} parent=1 // pred_check
      _
    $region27: #{tpu_custom_call.1} parent=1 // pred_check_branch
      %26 = sbr.rel (0) target = $region29
    $region28: #{tpu_custom_call.1} parent=1 // pred_region
      _
    $region29: #{tpu_custom_call.1} parent=1 // pred_fallthru
      _
    %v28 = vld [vmem:[%s0] sm:$0xf]
    %v29 = vld [vmem:[%s1] sm:$0xf]
    %v30 = vld [vmem:[%s1 + $0x4] sm:$0xf]
    %v31 = vld [vmem:[%s1 + $0x8] sm:$0xf]
    %v32 = vld [vmem:[%s1 + $0xc] sm:$0xf]
    %v37 = vunpack.c.l.b16 %v29
    %v38 = vunpack.c.l.b16 %v30
    %v39 = vunpack.c.l.b16 %v31
    %v40 = vunpack.c.l.b16 %v32
    %v41 = vpack.c.b16 %v38, %v37
    %v42 = vpack.c.b16 %v40, %v39
    %vm45 = vcmask 261120
    %v47 = vsel %vm45, %v28, 0
    %49 = vmatpush.bf16.msra.mxu0 0
    %50 = vmatpush.bf16.msra.mxu0 0
    %51 = vmatpush.bf16.msra.mxu0 0
    %52 = vmatpush.bf16.msra.mxu0 0
    %53 = vmatpush.bf16.msra.mxu0 0
    %54 = vmatpush.bf16.msra.mxu0 0
    %55 = vmatpush.bf16.msra.mxu0 %v42
    %56 = vmatpush.bf16.msra.mxu0 %v41
    %57 = vmatmul.bf16.gmra.mxu0 %v47
    %v58 = vpop.f32.mrf.mxu0
    %v59 = vadd.f32 0.0, %v58
    %v60 = vpop.f32.mrf.mxu0
    %61 = vdwg.mxu0
    %v62 = vld [vmem:[%s2] sm:$0xf]
    %v63 = vld [vmem:[%s2 + $0x4] sm:$0xf]
    %v64 = vld [vmem:[%s2 + $0x8] sm:$0xf]
    %v65 = vld [vmem:[%s2 + $0xc] sm:$0xf]
    %v70 = vunpack.c.l.b16 %v62
    %v71 = vunpack.c.l.b16 %v63
    %v72 = vunpack.c.l.b16 %v64
    %v73 = vunpack.c.l.b16 %v65
    %v74 = vpack.c.b16 %v71, %v70
    %v75 = vpack.c.b16 %v73, %v72
    %78 = vmatpush.bf16.msra.mxu0 0
    %79 = vmatpush.bf16.msra.mxu0 0
    %80 = vmatpush.bf16.msra.mxu0 0
    %81 = vmatpush.bf16.msra.mxu0 0
    %82 = vmatpush.bf16.msra.mxu0 0
    %83 = vmatpush.bf16.msra.mxu0 0
    %84 = vmatpush.bf16.msra.mxu0 %v75
    %85 = vmatpush.bf16.msra.mxu0 %v74
    %86 = vmatmul.bf16.gmra.mxu0 %v47
    %v87 = vpop.f32.mrf.mxu0
    %v88 = vadd.f32 0.0, %v87
    %v89 = vpop.f32.mrf.mxu0
    %90 = vdwg.mxu0
    %v91 = vld [vmem:[%s3] sm:$0x1]
    %v92 = vld [vmem:[%s4] sm:$0x1]
    %vm93 = vcmask 130048
    %v94 = vsel %vm93, %v59, 0.0
    %v95 = vrot.slane %v94, 4
    %v96 = vadd.f32 %v94, %v95
    %v97 = vrot.slane %v96, 2
    %v98 = vadd.f32 %v96, %v97
    %v99 = vrot.slane %v98, 1
    %v100 = vadd.f32 %v98, %v99
    %v101 = vrcp.pop 8.0
    %v102 = vmul.f32 8.0, %v101
    %v103 = vsub.f32 1.0, %v102
    %v104 = vmul.f32 %v101, %v103
    %v105 = vadd.f32 %v101, %v104
    %vm106 = vweird.f32 %v101
    %v107 = vsel %vm106, %v101, %v105
    %v108 = vmul.f32 %v100, %v107
    %v109 = vsub.f32 %v59, %v108
    %v110 = vmul.f32 %v109, %v109
    %v111 = vsel %vm93, %v110, 0.0
    %v112 = vrot.slane %v111, 4
    %v113 = vadd.f32 %v111, %v112
    %v114 = vrot.slane %v113, 2
    %v115 = vadd.f32 %v113, %v114
    %v116 = vrot.slane %v115, 1
    %v117 = vadd.f32 %v115, %v116
    %v118 = vmul.f32 %v117, %v107
    %v119 = vadd.f32 %v118, 1e-05
    %v120 = vrsqrt.pop %v119
    %v121 = vmul.f32 %v120, %v119
    %v122 = vmul.f32 %v121, %v120
    %v123 = vmul.f32 0.5, %v122
    %v124 = vsub.f32 1.5, %v123
    %v125 = vmul.f32 %v120, %v124
    %vm126 = vweird.f32 %v119
    %vm127 = vweird.f32 %v120
    %vm128 = vmor %vm126, %vm127
    %v129 = vsel %vm128, %v120, %v125
    %v130 = vmul.f32 %v109, %v129
    %v132 = vperm.slane %v91, 0
    %v134 = vmul.f32 %v130, %v132
    %v136 = vperm.slane %v92, 0
    %v138 = vadd.f32 %v134, %v136
    %v139 = vld [vmem:[%s5] sm:$0x1]
    %v140 = vld [vmem:[%s6] sm:$0x1]
    %v141 = vsel %vm93, %v88, 0.0
    %v142 = vrot.slane %v141, 4
    %v143 = vadd.f32 %v141, %v142
    %v144 = vrot.slane %v143, 2
    %v145 = vadd.f32 %v143, %v144
    %v146 = vrot.slane %v145, 1
    %v147 = vadd.f32 %v145, %v146
    %v148 = vmul.f32 %v147, %v107
    %v149 = vsub.f32 %v88, %v148
    %v150 = vmul.f32 %v149, %v149
    %v151 = vsel %vm93, %v150, 0.0
    %v152 = vrot.slane %v151, 4
    %v153 = vadd.f32 %v151, %v152
    %v154 = vrot.slane %v153, 2
    %v155 = vadd.f32 %v153, %v154
    %v156 = vrot.slane %v155, 1
    %v157 = vadd.f32 %v155, %v156
    %v158 = vmul.f32 %v157, %v107
    %v159 = vadd.f32 %v158, 1e-05
    %v160 = vrsqrt.pop %v159
    %v161 = vmul.f32 %v160, %v159
    %v162 = vmul.f32 %v161, %v160
    %v163 = vmul.f32 0.5, %v162
    %v164 = vsub.f32 1.5, %v163
    %v165 = vmul.f32 %v160, %v164
    %vm166 = vweird.f32 %v159
    %vm167 = vweird.f32 %v160
    %vm168 = vmor %vm166, %vm167
    %v169 = vsel %vm168, %v160, %v165
    %v170 = vmul.f32 %v149, %v169
    %v172 = vperm.slane %v139, 0
    %v174 = vmul.f32 %v170, %v172
    %v176 = vperm.slane %v140, 0
    %v178 = vadd.f32 %v174, %v176
    %v179 = vxor.u32 %v178, 2147483648
    %v180 = vmul.f32 %v179, 1.442695
    %v181 = vpow.pop %v180
    %v182 = vadd.f32 %v181, 1.0
    %v183 = vrcp.pop %v182
    %v184 = vmul.f32 %v182, %v183
    %v185 = vsub.f32 1.0, %v184
    %v186 = vmul.f32 %v183, %v185
    %v187 = vadd.f32 %v183, %v186
    %vm188 = vweird.f32 %v182
    %vm189 = vweird.f32 %v183
    %vm190 = vmor %vm188, %vm189
    %v191 = vsel %vm190, %v183, %v187
    %v192 = vand.u32 2147483647, %v182
    %vm193 = vcmp.eq.f32.partialorder %v192, 8.507059e+37
    %v194 = vand.u32 %v182, 2147483648
    %v195 = vor.u32 1.1754944e-38, %v194
    %v196 = vsel %vm193, %v195, %v191
    %v197 = vmul.f32 1.0, %v196
    %v198 = vmul.f32 %v138, %v197
    %199 = vst.msk [vmem:[#allocation2] sm:$0xff] %vm93, %v198
    // Predicated region
    $region30: #{tpu_custom_call.1} parent=1 // pred_check
      _
    $region31: #{tpu_custom_call.1} parent=1 // pred_check_branch
      %201 = sbr.rel (0) target = $region33
    $region32: #{tpu_custom_call.1} parent=1 // pred_region
      %203 = vsyncadd [#allocation3], 0
      %s205 = sshll.u32 [#allocation2], 4
      %s206 = int_to_ptr.vmem [resolvable:$true] %s205
      %s207 = sshll.u32 %s7, 4
      %s208 = int_to_ptr.hbm [resolvable:$true] %s207
      %210 = dma.vmem_to_hbm [thread:$0]  %s206, 128, %s208, [#allocation3]
    $region33: #{tpu_custom_call.1} parent=1 // pred_fallthru
      _
    // Predicated region
    $region34: #{tpu_custom_call.1} parent=1 // pred_check
      _
    $region35: #{tpu_custom_call.1} parent=1 // pred_check_branch
      %212 = sbr.rel (0) target = $region37
    $region36: #{tpu_custom_call.1} parent=1 // pred_region
      %214 = dma.done [#allocation3], 128
    $region37: #{tpu_custom_call.1} parent=1 // pred_fallthru
      _
    %215 = vsyncpa [#allocation3], 1

</llo_original>
